<compile_context>
chip_gen: v5e
topology: v5e:2x2
jax: 0.10.0
libtpu: 0.0.40
codegen_flags: <defaults>
</compile_context>

<pallas_src>
import jax
import jax.numpy as jnp
from jax import lax
from jax.experimental import pallas as pl
from jax.experimental.pallas import tpu as pltpu

# ---- sizes implied by the module --------------------------------------------
# forward() hard-codes x.view(B, 1, 100, 10) and pos_embed has 11 tokens, so the
# conv sees 1 input channel and must produce 10 patches  ->  patch_size = 10.
B = 2
IN_CHANS = 1
EMBED_DIM = 32
IMG_H, IMG_W = 100, 10
PATCH = 10
NUM_PATCHES = (IMG_H // PATCH) * (IMG_W // PATCH)      # 10
PATCH_ELEMS = IN_CHANS * PATCH * PATCH                 # 100 (conv receptive field)
NUM_TOKENS = NUM_PATCHES + 1                           # 11  (= pos_embed tokens)
SUBLANE = 8


def _round_up(n, m):
    return (n + m - 1) // m * m


def embedding_kernel(x_ref, w_ref, add_ref, o_ref):
    """Single gridless invocation; everything resident in VMEM.

    x_ref:   (rows_pad, PATCH_ELEMS)  flattened (batch*token) rows; the cls row
                                      of each batch element and the pad rows are
                                      all-zero, so their matmul contribution is 0
    w_ref:   (PATCH_ELEMS, EMBED_DIM) conv weight in (in, out) layout
    add_ref: (rows_pad, EMBED_DIM)    precomputed cls/bias + pos_embed table
    o_ref:   (rows_pad, EMBED_DIM)
    """
    z = jnp.dot(
        x_ref[...], w_ref[...],
        preferred_element_type=jnp.float32,
        precision=lax.Precision.HIGHEST,
    )
    o_ref[...] = (z + add_ref[...]).astype(o_ref.dtype)


@jax.jit
def embedding_forward(x, params):
    """x: (B, C, H, W) with C*H*W == 1000, exactly like the PyTorch module."""
    w, b, cls_tok, pos = params
    bx = x.shape[0]

    # Static shape guards (the module hard-codes the 1000-element view and 11 tokens).
    assert w.shape == (PATCH_ELEMS, EMBED_DIM), w.shape
    assert b.shape == (1, EMBED_DIM), b.shape
    assert cls_tok.shape == (1, EMBED_DIM), cls_tok.shape
    assert pos.shape == (NUM_TOKENS, EMBED_DIM), pos.shape

    rows = bx * NUM_TOKENS
    rows_pad = _round_up(rows, SUBLANE)                # 22 -> 24 (sublane aligned)

    # x.view(B, 1, 100, 10) + stride==kernel Conv2d means each patch is a
    # contiguous 100-element chunk of the flattened image: pure layout plumbing.
    # (reshape errors at trace time if C*H*W != 1000.)
    patches = x.reshape(bx, NUM_PATCHES, PATCH_ELEMS)
    # Prepend an all-zero "patch" per batch for the cls token (its projection is
    # exactly zero, matching the module), flatten batch*token, pad to 24 rows.
    tokens = jnp.pad(patches, ((0, 0), (1, 0), (0, 0)))
    tokens_flat = tokens.reshape(rows, PATCH_ELEMS)
    tokens_flat = jnp.pad(tokens_flat, ((0, rows_pad - rows), (0, 0)))

    # Additive table (one ref instead of bias + cls + pos):
    #   row 0 of each batch element: cls_token + pos[0]   (conv bias NOT applied
    #   to the cls token, matching the PyTorch module), rows 1..: bias + pos[i].
    add_tok = pos + jnp.concatenate(
        [cls_tok, jnp.broadcast_to(b, (NUM_PATCHES, EMBED_DIM))], axis=0)
    add_flat = jnp.tile(add_tok, (bx, 1))
    add_flat = jnp.pad(add_flat, ((0, rows_pad - rows), (0, 0)))

    cost = pl.CostEstimate(
        flops=2 * rows_pad * PATCH_ELEMS * EMBED_DIM,
        bytes_accessed=4 * (tokens_flat.size + w.size + add_flat.size
                            + rows_pad * EMBED_DIM),
        transcendentals=0,
    )

    vmem = pl.BlockSpec(memory_space=pltpu.MemorySpace.VMEM)
    out = pl.pallas_call(
        embedding_kernel,
        out_shape=jax.ShapeDtypeStruct((rows_pad, EMBED_DIM), x.dtype),
        in_specs=[vmem, vmem, vmem],
        out_specs=vmem,
        cost_estimate=cost,
    )(tokens_flat, w, add_flat)

    # Drop the sublane pad rows and restore (B, tokens, E).
    return out[:rows].reshape(bx, NUM_TOKENS, EMBED_DIM)


def reference_forward(x, params):
    """Pure-JAX replica of EmbeddingLayer.forward (uses a real conv) for validation."""
    w, b, cls_tok, pos = params
    bx = x.shape[0]
    xi = x.reshape(bx, 1, IMG_H, IMG_W)                           # x.view(B, 1, 100, 10)
    w_conv = w.T.reshape(EMBED_DIM, IN_CHANS, PATCH, PATCH)       # (out, in, kh, kw)
    emb = lax.conv_general_dilated(
        xi, w_conv, window_strides=(PATCH, PATCH), padding="VALID",
        dimension_numbers=("NCHW", "OIHW", "NCHW"),
        precision=lax.Precision.HIGHEST)                          # (B, E, 10, 1)
    emb = emb + b.reshape(1, EMBED_DIM, 1, 1)
    z = emb.reshape(bx, EMBED_DIM, -1).transpose(0, 2, 1)         # (B, 10, E)
    cls_b = jnp.broadcast_to(cls_tok.reshape(1, 1, EMBED_DIM), (bx, 1, EMBED_DIM))
    z = jnp.concatenate([cls_b, z], axis=1)                       # (B, 11, E)
    return z + pos.reshape(1, NUM_TOKENS, EMBED_DIM)


def init_params(key):
    kw, kb, kc, kp = jax.random.split(key, 4)
    # Conv2d weight stored as (in_features, out_features) = (100, E) so the
    # kernel computes patches @ W + b (equivalent to the flattened conv weight).
    w = 0.05 * jax.random.normal(kw, (PATCH_ELEMS, EMBED_DIM), jnp.float32)
    b = 0.05 * jax.random.normal(kb, (1, EMBED_DIM), jnp.float32)
    cls_tok = 1e-6 * jax.random.normal(kc, (1, EMBED_DIM), jnp.float32)   # init.normal_(std=1e-6)
    pos = 0.02 * jax.random.truncated_normal(                              # trunc_normal_(std=0.02)
        kp, -2.0, 2.0, (NUM_TOKENS, EMBED_DIM), jnp.float32)
    return (w, b, cls_tok, pos)


if __name__ == "__main__":
    key = jax.random.PRNGKey(0)
    kx, kparam = jax.random.split(key)
    # Any (B, C, H, W) with C*H*W == 1000 — the module re-views it to (B, 1, 100, 10).
    x = jax.random.normal(kx, (B, 10, 10, 10), jnp.float32)
    params = init_params(kparam)

    y = embedding_forward(x, params)
    jax.block_until_ready(y)

    y_ref = reference_forward(x, params)
    assert y.shape == (B, NUM_TOKENS, EMBED_DIM)
    assert jnp.allclose(y, y_ref, atol=1e-4, rtol=1e-4)

    print("KERNEL_OK")
</pallas_src>

<mosaic_0001>
module attributes {stable_mosaic.version = 11 : i64} {
  func.func @embedding_kernel(%arg0: memref<24x100xf32, #tpu.memory_space<vmem>>, %arg1: memref<100x32xf32, #tpu.memory_space<vmem>>, %arg2: memref<24x32xf32, #tpu.memory_space<vmem>>, %arg3: memref<24x32xf32, #tpu.memory_space<vmem>>) attributes {dimension_semantics = [], scalar_prefetch = 0 : i64, scratch_operands = 0 : i64, tpu.core_type = #tpu.core_type<tc>} {
    %c0 = arith.constant 0 : index
    %c0_0 = arith.constant 0 : index
    %0 = vector.load %arg0[%c0, %c0_0] : memref<24x100xf32, #tpu.memory_space<vmem>>, vector<24x100xf32>
    %c0_1 = arith.constant 0 : index
    %c0_2 = arith.constant 0 : index
    %1 = vector.load %arg1[%c0_1, %c0_2] : memref<100x32xf32, #tpu.memory_space<vmem>>, vector<100x32xf32>
    %cst = arith.constant dense<0.000000e+00> : vector<24x32xf32>
    %2 = tpu.matmul %0, %1, %cst {dimension_numbers = #tpu.dot_dimension_numbers<[1], [0], [0], [1], [0, 0, 1, 1], [], []>, precision = #tpu.contract_precision<fp32>} : vector<24x100xf32>, vector<100x32xf32>, vector<24x32xf32> -> vector<24x32xf32>
    %c0_3 = arith.constant 0 : index
    %c0_4 = arith.constant 0 : index
    %3 = vector.load %arg2[%c0_3, %c0_4] : memref<24x32xf32, #tpu.memory_space<vmem>>, vector<24x32xf32>
    %4 = arith.addf %2, %3 : vector<24x32xf32>
    %c0_5 = arith.constant 0 : index
    %c0_6 = arith.constant 0 : index
    %5 = vector.load %arg3[%c0_5, %c0_6] : memref<24x32xf32, #tpu.memory_space<vmem>>, vector<24x32xf32>
    tpu.vector_store %arg3[%c0_5, %c0_6], %4 {strides = array<i32>} : memref<24x32xf32, #tpu.memory_space<vmem>>, vector<24x32xf32>,
    return
  }
}

</mosaic_0001>

<llo_original>
// kernel: tile.9
$region0: #{tile.9}
  %s0 = inlined_call_operand.vmem [shape: f32[2,11,32], index: 0, kind: input, shape index: {}]
  %s1 = inlined_call_operand.vmem [shape: f32[22,32], index: 1, kind: output, shape index: {}]
  %v2 = vld [vmem:[%s0] sm:$0xff]
  %vm3 = vcmask 261120
  %4 = vst.msk [vmem:[%s1] sm:$0xff] %vm3, %v2
  %s5 = scalar_lea.vmem %s0, 8
  %v6 = vld [vmem:[%s5] sm:$0x7]
  %vm7 = vcmask 261120
  %s8 = scalar_lea.vmem %s1, 8
  %9 = vst.msk [vmem:[%s8] sm:$0x7] %vm7, %v6
  %s10 = scalar_lea.vmem %s0, 16
  %v11 = vld [vmem:[%s10] sm:$0xff]
  %vm12 = vcmask 261120
  %s13 = scalar_lea.vmem %s1, 11
  %14 = vst.msk [vmem:[%s13] sm:$0xff] %vm12, %v11
  %s15 = scalar_lea.vmem %s0, 24
  %v16 = vld [vmem:[%s15] sm:$0x7]
  %vm17 = vcmask 261120
  %s18 = scalar_lea.vmem %s1, 19
  %19 = vst.msk [vmem:[%s18] sm:$0x7] %vm17, %v16

// kernel: embedding_forward.1
$region0: #{embedding_forward.1}
  #allocation0 [shape = 'u32[]', space=smem, size = 0x4, offset = 0x4, fixed_abs, tag = 'smem constant byte address 0x4 - core index']
  #allocation1 [shape = 'u32[72,128]{1,0:T(1,128)}', space=vmem, size = 0x9000, scoped, tag = 'internal scratch']
  %s0 = inlined_call_operand.vmem [shape: f32[24,100], index: 0, kind: input, shape index: {}]
  %s1 = inlined_call_operand.vmem [shape: f32[100,32], index: 1, kind: input, shape index: {}]
  %s2 = inlined_call_operand.vmem [shape: f32[24,32], index: 2, kind: input, shape index: {}]
  %s3 = inlined_call_operand.vmem [shape: f32[24,32], index: 3, kind: output, shape index: {}]
  %s4 = sld [smem:[#allocation0]]
  $region22: #{embedding_forward.1} parent=0
    _
  %s6 = ssub.s32 1, %s4
  %s7 = scalar_select 0, %s6, %s4
  // Predicated region
  $region2: #{embedding_forward.1} parent=0 // pred_check
    _
  $region3: #{embedding_forward.1} parent=0 // pred_check_branch
    %9 = sbr.rel (0) target = $region5
  $region4: #{embedding_forward.1} parent=0 // pred_region
    _
  $region5: #{embedding_forward.1} parent=0 // pred_fallthru
    _
  // Predicated region
  $region6: #{embedding_forward.1} parent=0 // pred_check
    _
  $region7: #{embedding_forward.1} parent=0 // pred_check_branch
    %11 = sbr.rel (0) target = $region9
  $region8: #{embedding_forward.1} parent=0 // pred_region
    _
  $region9: #{embedding_forward.1} parent=0 // pred_fallthru
    _
  // Predicated region
  $region10: #{embedding_forward.1} parent=0 // pred_check
    _
  $region11: #{embedding_forward.1} parent=0 // pred_check_branch
    %13 = sbr.rel (0) target = $region13
  $region12: #{embedding_forward.1} parent=0 // pred_region
    _
  $region13: #{embedding_forward.1} parent=0 // pred_fallthru
    _
  %v14 = vld [vmem:[%s0] sm:$0xff]
  %v15 = vld [vmem:[%s0 + $0x8] sm:$0xff]
  %v16 = vld [vmem:[%s0 + $0x10] sm:$0xff]
  %v17 = vld [vmem:[%s1] sm:$0xff]
  %v18 = vld [vmem:[%s1 + $0x8] sm:$0xff]
  %v19 = vld [vmem:[%s1 + $0x10] sm:$0xff]
  %v20 = vld [vmem:[%s1 + $0x18] sm:$0xff]
  %v21 = vld [vmem:[%s1 + $0x20] sm:$0xff]
  %v22 = vld [vmem:[%s1 + $0x28] sm:$0xff]
  %v23 = vld [vmem:[%s1 + $0x30] sm:$0xff]
  %v24 = vld [vmem:[%s1 + $0x38] sm:$0xff]
  %v25 = vld [vmem:[%s1 + $0x40] sm:$0xff]
  %v26 = vld [vmem:[%s1 + $0x48] sm:$0xff]
  %v27 = vld [vmem:[%s1 + $0x50] sm:$0xff]
  %v28 = vld [vmem:[%s1 + $0x58] sm:$0xff]
  %v29 = vld [vmem:[%s1 + $0x60] sm:$0xf]
  %v30 = vld [vmem:[%s2] sm:$0xff]
  %v31 = vld [vmem:[%s2 + $0x8] sm:$0xff]
  %v32 = vld [vmem:[%s2 + $0x10] sm:$0xff]
  %vm33 = vcmask 818176
  %v35 = vsel %vm33, %v14, 0
  %v38 = vsel %vm33, %v15, 0
  %v41 = vsel %vm33, %v16, 0
  %vm43 = vcmask 1043456
  %v45 = vsel %vm43, %v29, 0
  %47 = vmatpush.msra.mxu0 0.0
  %48 = vmatpush.msra.mxu0 0.0
  %49 = vmatpush.msra.mxu0 0.0
  %v50 = vand.u32 %v45, 4294901760
  %51 = vmatpush.msra.mxu0 %v50
  %v52 = vand.u32 %v28, 4294901760
  %53 = vmatpush.msra.mxu0 %v52
  %v54 = vand.u32 %v27, 4294901760
  %55 = vmatpush.msra.mxu0 %v54
  %v56 = vand.u32 %v26, 4294901760
  %57 = vmatpush.msra.mxu0 %v56
  %v58 = vand.u32 %v25, 4294901760
  %59 = vmatpush.msra.mxu0 %v58
  %v60 = vand.u32 %v24, 4294901760
  %61 = vmatpush.msra.mxu0 %v60
  %v62 = vand.u32 %v23, 4294901760
  %63 = vmatpush.msra.mxu0 %v62
  %v64 = vand.u32 %v22, 4294901760
  %65 = vmatpush.msra.mxu0 %v64
  %v66 = vand.u32 %v21, 4294901760
  %67 = vmatpush.msra.mxu0 %v66
  %v68 = vand.u32 %v20, 4294901760
  %69 = vmatpush.msra.mxu0 %v68
  %v70 = vand.u32 %v19, 4294901760
  %71 = vmatpush.msra.mxu0 %v70
  %v72 = vand.u32 %v18, 4294901760
  %73 = vmatpush.msra.mxu0 %v72
  %v74 = vand.u32 %v17, 4294901760
  %75 = vmatpush.msra.mxu0 %v74
  %v76 = vand.u32 %v35, 4294901760
  %v77 = vsub.f32 %v35, %v76
  %v78 = vand.u32 %v77, 4294901760
  %v79 = vsub.f32 %v77, %v78
  %v80 = vand.u32 %v79, 4294901760
  %81 = vmatmul.f32.gmra.mxu0 %v80
  %v82 = vpop.f32.mrf.mxu0
  %v83 = vadd.f32 %v30, %v82
  %v84 = vand.u32 %v38, 4294901760
  %v85 = vsub.f32 %v38, %v84
  %v86 = vand.u32 %v85, 4294901760
  %v87 = vsub.f32 %v85, %v86
  %v88 = vand.u32 %v87, 4294901760
  %89 = vmatmul.f32.gmra.mxu0 %v88
  %v90 = vpop.f32.mrf.mxu0
  %v91 = vadd.f32 %v31, %v90
  %v92 = vand.u32 %v41, 4294901760
  %v93 = vsub.f32 %v41, %v92
  %v94 = vand.u32 %v93, 4294901760
  %v95 = vsub.f32 %v93, %v94
  %v96 = vand.u32 %v95, 4294901760
  %97 = vmatmul.f32.gmra.mxu0 %v96
  %v98 = vpop.f32.mrf.mxu0
  %v99 = vadd.f32 %v32, %v98
  %100 = vdwg.mxu0
  %101 = vmatpush.msra.mxu0 0.0
  %102 = vmatpush.msra.mxu0 0.0
  %103 = vmatpush.msra.mxu0 0.0
  %v104 = vand.u32 %v45, 4294901760
  %v105 = vsub.f32 %v45, %v104
  %v106 = vand.u32 %v105, 4294901760
  %v107 = vsub.f32 %v105, %v106
  %v108 = vand.u32 %v107, 4294901760
  %109 = vmatpush.msra.mxu0 %v108
  %v110 = vand.u32 %v28, 4294901760
  %v111 = vsub.f32 %v28, %v110
  %v112 = vand.u32 %v111, 4294901760
  %v113 = vsub.f32 %v111, %v112
  %v114 = vand.u32 %v113, 4294901760
  %115 = vmatpush.msra.mxu0 %v114
  %v116 = vand.u32 %v27, 4294901760
  %v117 = vsub.f32 %v27, %v116
  %v118 = vand.u32 %v117, 4294901760
  %v119 = vsub.f32 %v117, %v118
  %v120 = vand.u32 %v119, 4294901760
  %121 = vmatpush.msra.mxu0 %v120
  %v122 = vand.u32 %v26, 4294901760
  %v123 = vsub.f32 %v26, %v122
  %v124 = vand.u32 %v123, 4294901760
  %v125 = vsub.f32 %v123, %v124
  %v126 = vand.u32 %v125, 4294901760
  %127 = vmatpush.msra.mxu0 %v126
  %v128 = vand.u32 %v25, 4294901760
  %v129 = vsub.f32 %v25, %v128
  %v130 = vand.u32 %v129, 4294901760
  %v131 = vsub.f32 %v129, %v130
  %v132 = vand.u32 %v131, 4294901760
  %133 = vmatpush.msra.mxu0 %v132
  %v134 = vand.u32 %v24, 4294901760
  %v135 = vsub.f32 %v24, %v134
  %v136 = vand.u32 %v135, 4294901760
  %v137 = vsub.f32 %v135, %v136
  %v138 = vand.u32 %v137, 4294901760
  %139 = vmatpush.msra.mxu0 %v138
  %v140 = vand.u32 %v23, 4294901760
  %v141 = vsub.f32 %v23, %v140
  %v142 = vand.u32 %v141, 4294901760
  %v143 = vsub.f32 %v141, %v142
  %v144 = vand.u32 %v143, 4294901760
  %145 = vmatpush.msra.mxu0 %v144
  %v146 = vand.u32 %v22, 4294901760
  %v147 = vsub.f32 %v22, %v146
  %v148 = vand.u32 %v147, 4294901760
  %v149 = vsub.f32 %v147, %v148
  %v150 = vand.u32 %v149, 4294901760
  %151 = vmatpush.msra.mxu0 %v150
  %v152 = vand.u32 %v21, 4294901760
  %v153 = vsub.f32 %v21, %v152
  %v154 = vand.u32 %v153, 4294901760
  %v155 = vsub.f32 %v153, %v154
  %v156 = vand.u32 %v155, 4294901760
  %157 = vmatpush.msra.mxu0 %v156
  %v158 = vand.u32 %v20, 4294901760
  %v159 = vsub.f32 %v20, %v158
  %v160 = vand.u32 %v159, 4294901760
  %v161 = vsub.f32 %v159, %v160
  %v162 = vand.u32 %v161, 4294901760
  %163 = vmatpush.msra.mxu0 %v162
  %v164 = vand.u32 %v19, 4294901760
  %v165 = vsub.f32 %v19, %v164
  %v166 = vand.u32 %v165, 4294901760
  %v167 = vsub.f32 %v165, %v166
  %v168 = vand.u32 %v167, 4294901760
  %169 = vmatpush.msra.mxu0 %v168
  %v170 = vand.u32 %v18, 4294901760
  %v171 = vsub.f32 %v18, %v170
  %v172 = vand.u32 %v171, 4294901760
  %v173 = vsub.f32 %v171, %v172
  %v174 = vand.u32 %v173, 4294901760
  %175 = vmatpush.msra.mxu0 %v174
  %v176 = vand.u32 %v17, 4294901760
  %v177 = vsub.f32 %v17, %v176
  %v178 = vand.u32 %v177, 4294901760
  %v179 = vsub.f32 %v177, %v178
  %v180 = vand.u32 %v179, 4294901760
  %181 = vmatpush.msra.mxu0 %v180
  %v182 = vand.u32 %v35, 4294901760
  %183 = vmatmul.f32.gmra.mxu0 %v182
  %v184 = vpop.f32.mrf.mxu0
  %v185 = vadd.f32 %v83, %v184
  %v186 = vand.u32 %v38, 4294901760
  %187 = vmatmul.f32.gmra.mxu0 %v186
  %v188 = vpop.f32.mrf.mxu0
  %v189 = vadd.f32 %v91, %v188
  %v190 = vand.u32 %v41, 4294901760
  %191 = vmatmul.f32.gmra.mxu0 %v190
  %v192 = vpop.f32.mrf.mxu0
  %v193 = vadd.f32 %v99, %v192
  %194 = vdwg.mxu0
  %195 = vmatpush.msra.mxu0 0.0
  %196 = vmatpush.msra.mxu0 0.0
  %197 = vmatpush.msra.mxu0 0.0
  %v198 = vand.u32 %v45, 4294901760
  %v199 = vsub.f32 %v45, %v198
  %200 = vmatpush.msra.mxu0 %v199
  %v201 = vand.u32 %v28, 4294901760
  %v202 = vsub.f32 %v28, %v201
  %203 = vmatpush.msra.mxu0 %v202
  %v204 = vand.u32 %v27, 4294901760
  %v205 = vsub.f32 %v27, %v204
  %206 = vmatpush.msra.mxu0 %v205
  %v207 = vand.u32 %v26, 4294901760
  %v208 = vsub.f32 %v26, %v207
  %209 = vmatpush.msra.mxu0 %v208
  %v210 = vand.u32 %v25, 4294901760
  %v211 = vsub.f32 %v25, %v210
  %212 = vmatpush.msra.mxu0 %v211
  %v213 = vand.u32 %v24, 4294901760
  %v214 = vsub.f32 %v24, %v213
  %215 = vmatpush.msra.mxu0 %v214
  %v216 = vand.u32 %v23, 4294901760
  %v217 = vsub.f32 %v23, %v216
  %218 = vmatpush.msra.mxu0 %v217
  %v219 = vand.u32 %v22, 4294901760
  %v220 = vsub.f32 %v22, %v219
  %221 = vmatpush.msra.mxu0 %v220
  %v222 = vand.u32 %v21, 4294901760
  %v223 = vsub.f32 %v21, %v222
  %224 = vmatpush.msra.mxu0 %v223
  %v225 = vand.u32 %v20, 4294901760
  %v226 = vsub.f32 %v20, %v225
  %227 = vmatpush.msra.mxu0 %v226
  %v228 = vand.u32 %v19, 4294901760
  %v229 = vsub.f32 %v19, %v228
  %230 = vmatpush.msra.mxu0 %v229
  %v231 = vand.u32 %v18, 4294901760
  %v232 = vsub.f32 %v18, %v231
  %233 = vmatpush.msra.mxu0 %v232
  %v234 = vand.u32 %v17, 4294901760
  %v235 = vsub.f32 %v17, %v234
  %236 = vmatpush.msra.mxu0 %v235
  %v237 = vand.u32 %v35, 4294901760
  %v238 = vsub.f32 %v35, %v237
  %239 = vmatmul.f32.gmra.mxu0 %v238
  %v240 = vpop.f32.mrf.mxu0
  %v241 = vadd.f32 %v185, %v240
  %v242 = vand.u32 %v38, 4294901760
  %v243 = vsub.f32 %v38, %v242
  %244 = vmatmul.f32.gmra.mxu0 %v243
  %v245 = vpop.f32.mrf.mxu0
  %v246 = vadd.f32 %v189, %v245
  %v247 = vand.u32 %v41, 4294901760
  %v248 = vsub.f32 %v41, %v247
  %249 = vmatmul.f32.gmra.mxu0 %v248
  %v250 = vpop.f32.mrf.mxu0
  %v251 = vadd.f32 %v193, %v250
  %252 = vdwg.mxu0
  %253 = vmatpush.msra.mxu0 0.0
  %254 = vmatpush.msra.mxu0 0.0
  %255 = vmatpush.msra.mxu0 0.0
  %v256 = vand.u32 %v45, 4294901760
  %257 = vmatpush.msra.mxu0 %v256
  %v258 = vand.u32 %v28, 4294901760
  %259 = vmatpush.msra.mxu0 %v258
  %v260 = vand.u32 %v27, 4294901760
  %261 = vmatpush.msra.mxu0 %v260
  %v262 = vand.u32 %v26, 4294901760
  %263 = vmatpush.msra.mxu0 %v262
  %v264 = vand.u32 %v25, 4294901760
  %265 = vmatpush.msra.mxu0 %v264
  %v266 = vand.u32 %v24, 4294901760
  %267 = vmatpush.msra.mxu0 %v266
  %v268 = vand.u32 %v23, 4294901760
  %269 = vmatpush.msra.mxu0 %v268
  %v270 = vand.u32 %v22, 4294901760
  %271 = vmatpush.msra.mxu0 %v270
  %v272 = vand.u32 %v21, 4294901760
  %273 = vmatpush.msra.mxu0 %v272
  %v274 = vand.u32 %v20, 4294901760
  %275 = vmatpush.msra.mxu0 %v274
  %v276 = vand.u32 %v19, 4294901760
  %277 = vmatpush.msra.mxu0 %v276
  %v278 = vand.u32 %v18, 4294901760
  %279 = vmatpush.msra.mxu0 %v278
  %v280 = vand.u32 %v17, 4294901760
  %281 = vmatpush.msra.mxu0 %v280
  %v282 = vand.u32 %v35, 4294901760
  %v283 = vsub.f32 %v35, %v282
  %v284 = vand.u32 %v283, 4294901760
  %285 = vmatmul.f32.gmra.mxu0 %v284
  %v286 = vpop.f32.mrf.mxu0
  %v287 = vadd.f32 %v241, %v286
  %v288 = vand.u32 %v38, 4294901760
  %v289 = vsub.f32 %v38, %v288
  %v290 = vand.u32 %v289, 4294901760
  %291 = vmatmul.f32.gmra.mxu0 %v290
  %v292 = vpop.f32.mrf.mxu0
  %v293 = vadd.f32 %v246, %v292
  %v294 = vand.u32 %v41, 4294901760
  %v295 = vsub.f32 %v41, %v294
  %v296 = vand.u32 %v295, 4294901760
  %297 = vmatmul.f32.gmra.mxu0 %v296
  %v298 = vpop.f32.mrf.mxu0
  %v299 = vadd.f32 %v251, %v298
  %300 = vdwg.mxu0
  %301 = vmatpush.msra.mxu0 0.0
  %302 = vmatpush.msra.mxu0 0.0
  %303 = vmatpush.msra.mxu0 0.0
  %v304 = vand.u32 %v45, 4294901760
  %v305 = vsub.f32 %v45, %v304
  %v306 = vand.u32 %v305, 4294901760
  %307 = vmatpush.msra.mxu0 %v306
  %v308 = vand.u32 %v28, 4294901760
  %v309 = vsub.f32 %v28, %v308
  %v310 = vand.u32 %v309, 4294901760
  %311 = vmatpush.msra.mxu0 %v310
  %v312 = vand.u32 %v27, 4294901760
  %v313 = vsub.f32 %v27, %v312
  %v314 = vand.u32 %v313, 4294901760
  %315 = vmatpush.msra.mxu0 %v314
  %v316 = vand.u32 %v26, 4294901760
  %v317 = vsub.f32 %v26, %v316
  %v318 = vand.u32 %v317, 4294901760
  %319 = vmatpush.msra.mxu0 %v318
  %v320 = vand.u32 %v25, 4294901760
  %v321 = vsub.f32 %v25, %v320
  %v322 = vand.u32 %v321, 4294901760
  %323 = vmatpush.msra.mxu0 %v322
  %v324 = vand.u32 %v24, 4294901760
  %v325 = vsub.f32 %v24, %v324
  %v326 = vand.u32 %v325, 4294901760
  %327 = vmatpush.msra.mxu0 %v326
  %v328 = vand.u32 %v23, 4294901760
  %v329 = vsub.f32 %v23, %v328
  %v330 = vand.u32 %v329, 4294901760
  %331 = vmatpush.msra.mxu0 %v330
  %v332 = vand.u32 %v22, 4294901760
  %v333 = vsub.f32 %v22, %v332
  %v334 = vand.u32 %v333, 4294901760
  %335 = vmatpush.msra.mxu0 %v334
  %v336 = vand.u32 %v21, 4294901760
  %v337 = vsub.f32 %v21, %v336
  %v338 = vand.u32 %v337, 4294901760
  %339 = vmatpush.msra.mxu0 %v338
  %v340 = vand.u32 %v20, 4294901760
  %v341 = vsub.f32 %v20, %v340
  %v342 = vand.u32 %v341, 4294901760
  %343 = vmatpush.msra.mxu0 %v342
  %v344 = vand.u32 %v19, 4294901760
  %v345 = vsub.f32 %v19, %v344
  %v346 = vand.u32 %v345, 4294901760
  %347 = vmatpush.msra.mxu0 %v346
  %v348 = vand.u32 %v18, 4294901760
  %v349 = vsub.f32 %v18, %v348
  %v350 = vand.u32 %v349, 4294901760
  %351 = vmatpush.msra.mxu0 %v350
  %v352 = vand.u32 %v17, 4294901760
  %v353 = vsub.f32 %v17, %v352
  %v354 = vand.u32 %v353, 4294901760
  %355 = vmatpush.msra.mxu0 %v354
  %v356 = vand.u32 %v35, 4294901760
  %357 = vmatmul.f32.gmra.mxu0 %v356
  %v358 = vpop.f32.mrf.mxu0
  %v359 = vadd.f32 %v287, %v358
  %v360 = vand.u32 %v38, 4294901760
  %361 = vmatmul.f32.gmra.mxu0 %v360
  %v362 = vpop.f32.mrf.mxu0
  %v363 = vadd.f32 %v293, %v362
  %v364 = vand.u32 %v41, 4294901760
  %365 = vmatmul.f32.gmra.mxu0 %v364
  %v366 = vpop.f32.mrf.mxu0
  %v367 = vadd.f32 %v299, %v366
  %368 = vdwg.mxu0
  %369 = vmatpush.msra.mxu0 0.0
  %370 = vmatpush.msra.mxu0 0.0
  %371 = vmatpush.msra.mxu0 0.0
  %v372 = vand.u32 %v45, 4294901760
  %373 = vmatpush.msra.mxu0 %v372
  %v374 = vand.u32 %v28, 4294901760
  %375 = vmatpush.msra.mxu0 %v374
  %v376 = vand.u32 %v27, 4294901760
  %377 = vmatpush.msra.mxu0 %v376
  %v378 = vand.u32 %v26, 4294901760
  %379 = vmatpush.msra.mxu0 %v378
  %v380 = vand.u32 %v25, 4294901760
  %381 = vmatpush.msra.mxu0 %v380
  %v382 = vand.u32 %v24, 4294901760
  %383 = vmatpush.msra.mxu0 %v382
  %v384 = vand.u32 %v23, 4294901760
  %385 = vmatpush.msra.mxu0 %v384
  %v386 = vand.u32 %v22, 4294901760
  %387 = vmatpush.msra.mxu0 %v386
  %v388 = vand.u32 %v21, 4294901760
  %389 = vmatpush.msra.mxu0 %v388
  %v390 = vand.u32 %v20, 4294901760
  %391 = vmatpush.msra.mxu0 %v390
  %v392 = vand.u32 %v19, 4294901760
  %393 = vmatpush.msra.mxu0 %v392
  %v394 = vand.u32 %v18, 4294901760
  %395 = vmatpush.msra.mxu0 %v394
  %v396 = vand.u32 %v17, 4294901760
  %397 = vmatpush.msra.mxu0 %v396
  %v398 = vand.u32 %v35, 4294901760
  %399 = vmatmul.f32.gmra.mxu0 %v398
  %v400 = vpop.f32.mrf.mxu0
  %v401 = vadd.f32 %v359, %v400
  %v402 = vand.u32 %v38, 4294901760
  %403 = vmatmul.f32.gmra.mxu0 %v402
  %v404 = vpop.f32.mrf.mxu0
  %v405 = vadd.f32 %v363, %v404
  %v406 = vand.u32 %v41, 4294901760
  %407 = vmatmul.f32.gmra.mxu0 %v406
  %v408 = vpop.f32.mrf.mxu0
  %v409 = vadd.f32 %v367, %v408
  %410 = vdwg.mxu0
  %vm411 = vcmask 261120
  %412 = vst.msk [vmem:[%s3] sm:$0xff] %vm411, %v401
  %413 = vst.msk [vmem:[%s3 + $0x8] sm:$0xff] %vm411, %v405
  %414 = vst.msk [vmem:[%s3 + $0x10] sm:$0xff] %vm411, %v409
  // Predicated region
  $region14: #{embedding_forward.1} parent=0 // pred_check
    _
  $region15: #{embedding_forward.1} parent=0 // pred_check_branch
    %416 = sbr.rel (0) target = $region17
  $region16: #{embedding_forward.1} parent=0 // pred_region
    _
  $region17: #{embedding_forward.1} parent=0 // pred_fallthru
    _
  // Predicated region
  $region18: #{embedding_forward.1} parent=0 // pred_check
    _
  $region19: #{embedding_forward.1} parent=0 // pred_check_branch
    %418 = sbr.rel (0) target = $region21
  $region20: #{embedding_forward.1} parent=0 // pred_region
    _
  $region21: #{embedding_forward.1} parent=0 // pred_fallthru
    _

</llo_original>
